<compile_context>
chip_gen: v7x
topology: tpu7x:2x2x1
jax: 0.10.0
libtpu: 0.0.40
codegen_flags: <defaults>
</compile_context>

<pallas_src>
import jax
import jax.numpy as jnp
from jax.experimental import pallas as pl
from jax.experimental.pallas import tpu as pltpu

# ---- problem sizes (small, consistent with the module's __init__) ----
N = 16          # number of nodes
IN_SIZE = 8     # in_size
OUT_SIZE = 4    # out_size
NUM_HEADS = 2   # layer_num_heads
HD = NUM_HEADS * OUT_SIZE
NUM_META_PATHS = 3          # meta_paths given to __init__
KEPT_PATHS = (0, 2)         # forward() skips i == 1
P = len(KEPT_PATHS)
PH = P * NUM_HEADS
PHD = P * HD                # final output width
AUG = PHD + 2 * PH          # augmented-weight width: [ z | e_l | e_r ] columns
NEG_SLOPE = 0.2             # DGL GATConv default
NEG_BIG = -1e30             # finite "masked out" logit (exp underflows cleanly to 0)


def pnn_gat_kernel(h_ref, params_ref, adj_ref, out_ref):
    """All kept meta-paths / heads in one invocation.

    h_ref     : (N, F_in)         node features
    params_ref: (F_in + 1, AUG)   rows 0..F_in-1 = [ W_cat | W@attn_l | W@attn_r ]
                                  row  F_in      = [ bias  |    0     |    0     ]
    adj_ref   : (P, N, N)         adj[p, v, u] = 1 iff edge u -> v (NOT head-repeated)
    out_ref   : (N, P*H*D)        final layout (== torch.stack(dim=1).flatten(1))
    """
    h = h_ref[...]
    w_aug = params_ref[0:IN_SIZE, :]                                  # (F_in, AUG)
    bias = params_ref[IN_SIZE:IN_SIZE + 1, :]                         # (1, AUG)

    # one fused MXU matmul: projection for all meta-paths + both attention logits
    z_aug = jnp.dot(h, w_aug, preferred_element_type=jnp.float32)     # (N, AUG)
    z = z_aug[:, :PHD]                                                # (N, P*HD)

    # single tiny transpose for both logit blocks (node axis onto lanes)
    lr_t = z_aug[:, PHD:].T                                           # (2*PH, N)
    el_t = lr_t[:PH].reshape(P, NUM_HEADS, N)                         # [p, h, u]
    er_t = lr_t[PH:].reshape(P, NUM_HEADS, N)                         # [p, h, v]

    # e[p, h, v, u] = leaky_relu(el[u] + er[v])
    e = el_t[:, :, None, :] + er_t[:, :, :, None]                     # (P, H, N, N)
    e = jnp.where(e > 0, e, NEG_SLOPE * e)

    # masked softmax over source nodes u; mask broadcast over heads in-kernel.
    # Masked-max shift (exact reference semantics); masked entries get a huge
    # negative logit so exp underflows to exactly 0 — no second N^2 select needed.
    mask = (adj_ref[...] > 0.0)[:, None, :, :]                        # (P, 1, N, N)
    em = jnp.where(mask, e, NEG_BIG)                                  # (P, H, N, N)
    m = jnp.max(em, axis=-1, keepdims=True)                           # masked row max
    m = jnp.where(m > 0.5 * NEG_BIG, m, 0.0)                          # zero in-degree guard
    pmat = jnp.exp(em - m)                                            # masked -> 0.0
    s = jnp.sum(pmat, axis=-1, keepdims=True)                         # (P, H, N, 1)
    # approx=True would push the divide to the EUP but its relative error is too
    # large for the 1e-4 check against the exact-division reference.
    inv_s = pl.reciprocal(jnp.where(s > 0.0, s, 1.0), approx=False)   # (P, H, N, 1)

    # deferred normalization: aggregate with un-normalized weights, scale the
    # small (N, D) result, add bias, ELU, and store straight into the final
    # output column slice (no lane-axis concatenate, alpha never materialized).
    for pi in range(P):
        for hi in range(NUM_HEADS):
            c0 = pi * HD + hi * OUT_SIZE
            zh = z[:, c0:c0 + OUT_SIZE]                               # (N, D)
            rst = jnp.dot(pmat[pi, hi], zh,
                          preferred_element_type=jnp.float32)         # (N, D)
            rst = rst * inv_s[pi, hi] + bias[:, c0:c0 + OUT_SIZE]
            out_ref[:, c0:c0 + OUT_SIZE] = jnp.where(
                rst > 0, rst, jnp.exp(jnp.minimum(rst, 0.0)) - 1.0
            ).astype(out_ref.dtype)


def pnn_layer_forward(h, adj, W, attn_l, attn_r, bias):
    """h: (N, F_in); adj: (P, N, N); W: (P, F_in, H*D);
    attn_l/attn_r: (P, H, D); bias: (P, H*D).  Returns (N, P*H*D)."""
    n, f_in = h.shape
    assert adj.shape[0] == P and f_in == IN_SIZE

    # Fold the attention-logit matmuls into the projection:
    #   z_aug = h @ [ W_cat | W@attn_l | W@attn_r ]
    w_cat = jnp.moveaxis(W, 0, 1).reshape(f_in, PHD)                  # (F_in, P*HD)
    W_r = W.reshape(P, f_in, NUM_HEADS, OUT_SIZE)
    wal = jnp.einsum('pfhd,phd->fph', W_r, attn_l).reshape(f_in, PH)  # (F_in, PH)
    war = jnp.einsum('pfhd,phd->fph', W_r, attn_r).reshape(f_in, PH)  # (F_in, PH)
    w_aug = jnp.concatenate([w_cat, wal, war], axis=1)                # (F_in, AUG)

    # pack bias as an extra parameter row -> one fewer DMA descriptor
    bias_row = jnp.concatenate(
        [bias.reshape(1, PHD), jnp.zeros((1, 2 * PH), jnp.float32)], axis=1)
    params = jnp.concatenate([w_aug, bias_row], axis=0)               # (F_in+1, AUG)

    vmem = pl.BlockSpec(memory_space=pltpu.MemorySpace.VMEM)
    out = pl.pallas_call(
        pnn_gat_kernel,
        out_shape=jax.ShapeDtypeStruct((n, PHD), jnp.float32),
        in_specs=[vmem, vmem, vmem],                                  # 3 DMAs total
        out_specs=vmem,
        # rough but honest numbers; helps XLA schedule this tiny custom call
        cost_estimate=pl.CostEstimate(
            flops=21248, transcendentals=1344, bytes_accessed=4448),
    )(h, params, adj.astype(jnp.float32))

    # already node-major, meta-path-major then head*out:
    # matches torch.stack(dim=1).flatten(1) -- no wrapper transpose needed.
    return out


def pure_jax_reference(h, adj, W, attn_l, attn_r, bias):
    """Independent reference of DGL GATConv (eval mode) for correctness check."""
    outs = []
    for i in range(adj.shape[0]):
        z = h @ W[i]                                     # (N, H*D)
        zr = z.reshape(N, NUM_HEADS, OUT_SIZE)
        el = (zr * attn_l[i][None]).sum(-1)              # (N, H)
        er = (zr * attn_r[i][None]).sum(-1)              # (N, H)
        e = el[None, :, :] + er[:, None, :]              # (dst, src, H)
        e = jnp.where(e > 0, e, NEG_SLOPE * e)
        mask = adj[i][:, :, None] > 0
        e = jnp.where(mask, e, -jnp.inf)
        m = jnp.max(e, axis=1, keepdims=True)
        m = jnp.where(jnp.isfinite(m), m, 0.0)
        pexp = jnp.where(mask, jnp.exp(e - m), 0.0)
        s = pexp.sum(axis=1, keepdims=True)
        alpha = pexp / jnp.where(s > 0, s, 1.0)
        rst = jnp.einsum('vuh,uhd->vhd', alpha, zr)
        rst = rst + bias[i].reshape(1, NUM_HEADS, OUT_SIZE)
        rst = jnp.where(rst > 0, rst, jnp.exp(jnp.minimum(rst, 0.0)) - 1.0)
        outs.append(rst.reshape(N, HD))
    return jnp.stack(outs, axis=1).reshape(N, -1)


if __name__ == "__main__":
    key = jax.random.PRNGKey(0)
    k_h, k_adj, k_w, k_al, k_ar, k_b = jax.random.split(key, 6)

    # node features
    h = jax.random.normal(k_h, (N, IN_SIZE), jnp.float32)

    # dense adjacency for each of the 3 meta-path reachable graphs; keep i != 1
    adj_all = (jax.random.uniform(k_adj, (NUM_META_PATHS, N, N)) < 0.3).astype(jnp.float32)
    adj = adj_all[jnp.array(KEPT_PATHS)]                       # (P, N, N)

    # deterministic GATConv parameters (one per meta-path, kept ones selected)
    W_all = 0.3 * jax.random.normal(k_w, (NUM_META_PATHS, IN_SIZE, HD), jnp.float32)
    al_all = 0.3 * jax.random.normal(k_al, (NUM_META_PATHS, NUM_HEADS, OUT_SIZE), jnp.float32)
    ar_all = 0.3 * jax.random.normal(k_ar, (NUM_META_PATHS, NUM_HEADS, OUT_SIZE), jnp.float32)
    b_all = 0.1 * jax.random.normal(k_b, (NUM_META_PATHS, HD), jnp.float32)

    sel = jnp.array(KEPT_PATHS)
    W, attn_l, attn_r, bias = W_all[sel], al_all[sel], ar_all[sel], b_all[sel]

    out = pnn_layer_forward(h, adj, W, attn_l, attn_r, bias)
    out = jax.block_until_ready(out)
    assert out.shape == (N, PHD), out.shape

    ref = pure_jax_reference(h, adj, W, attn_l, attn_r, bias)
    assert jnp.allclose(out, ref, atol=1e-4, rtol=1e-4), (
        float(jnp.max(jnp.abs(out - ref))))

    print("KERNEL_OK")
</pallas_src>

<mosaic_0001>
module attributes {stable_mosaic.version = 11 : i64} {
  func.func @pnn_gat_kernel(%arg0: memref<16x8xf32, #tpu.memory_space<vmem>>, %arg1: memref<9x24xf32, #tpu.memory_space<vmem>>, %arg2: memref<2x16x16xf32, #tpu.memory_space<vmem>>, %arg3: memref<16x16xf32, #tpu.memory_space<vmem>>) attributes {dimension_semantics = [], scalar_prefetch = 0 : i64, scratch_operands = 0 : i64, tpu.core_type = #tpu.core_type<tc>} {
    %c0 = arith.constant 0 : index
    %c0_0 = arith.constant 0 : index
    %0 = vector.load %arg0[%c0, %c0_0] : memref<16x8xf32, #tpu.memory_space<vmem>>, vector<16x8xf32>
    %c0_1 = arith.constant 0 : index
    %c0_2 = arith.constant 0 : index
    %1 = vector.load %arg1[%c0_1, %c0_2] : memref<9x24xf32, #tpu.memory_space<vmem>>, vector<8x24xf32>
    %c8 = arith.constant 8 : index
    %c0_3 = arith.constant 0 : index
    %2 = vector.load %arg1[%c8, %c0_3] : memref<9x24xf32, #tpu.memory_space<vmem>>, vector<1x24xf32>
    %cst = arith.constant dense<0.000000e+00> : vector<16x24xf32>
    %3 = tpu.matmul %0, %1, %cst {dimension_numbers = #tpu.dot_dimension_numbers<[1], [0], [0], [1], [0, 0, 1, 1], [], []>} : vector<16x8xf32>, vector<8x24xf32>, vector<16x24xf32> -> vector<16x24xf32>
    %4 = vector.extract_strided_slice %3 {offsets = [0, 0], sizes = [16, 16], strides = [1, 1]} : vector<16x24xf32> to vector<16x16xf32>
    %5 = vector.extract_strided_slice %3 {offsets = [0, 16], sizes = [16, 8], strides = [1, 1]} : vector<16x24xf32> to vector<16x8xf32>
    %6 = tpu.transpose %5, [1, 0] : vector<16x8xf32> -> vector<8x16xf32>
    %7 = vector.extract_strided_slice %6 {offsets = [0, 0], sizes = [4, 16], strides = [1, 1]} : vector<8x16xf32> to vector<4x16xf32>
    %8 = vector.shape_cast %7 : vector<4x16xf32> to vector<2x2x16xf32>
    %9 = vector.extract_strided_slice %6 {offsets = [4, 0], sizes = [4, 16], strides = [1, 1]} : vector<8x16xf32> to vector<4x16xf32>
    %10 = vector.shape_cast %9 : vector<4x16xf32> to vector<2x2x16xf32>
    %11 = vector.shape_cast %8 : vector<2x2x16xf32> to vector<2x2x1x16xf32>
    %12 = vector.shape_cast %10 : vector<2x2x16xf32> to vector<2x2x16x1xf32>
    %13 = vector.broadcast %11 : vector<2x2x1x16xf32> to vector<2x2x16x16xf32>
    %14 = vector.broadcast %12 : vector<2x2x16x1xf32> to vector<2x2x16x16xf32>
    %15 = arith.addf %13, %14 : vector<2x2x16x16xf32>
    %cst_4 = arith.constant 0.000000e+00 : f32
    %16 = vector.broadcast %cst_4 : f32 to vector<2x2x16x16xf32>
    %17 = arith.cmpf ogt, %15, %16 : vector<2x2x16x16xf32>
    %cst_5 = arith.constant 2.000000e-01 : f32
    %18 = vector.broadcast %cst_5 : f32 to vector<2x2x16x16xf32>
    %19 = arith.mulf %18, %15 : vector<2x2x16x16xf32>
    %20 = arith.select %17, %15, %19 : vector<2x2x16x16xi1>, vector<2x2x16x16xf32>
    %c0_6 = arith.constant 0 : index
    %c0_7 = arith.constant 0 : index
    %c0_8 = arith.constant 0 : index
    %21 = vector.load %arg2[%c0_6, %c0_7, %c0_8] : memref<2x16x16xf32, #tpu.memory_space<vmem>>, vector<2x16x16xf32>
    %cst_9 = arith.constant 0.000000e+00 : f32
    %22 = vector.broadcast %cst_9 : f32 to vector<2x16x16xf32>
    %23 = arith.cmpf ogt, %21, %22 : vector<2x16x16xf32>
    %24 = vector.shape_cast %23 : vector<2x16x16xi1> to vector<2x1x16x16xi1>
    %cst_10 = arith.constant -1.000000e+30 : f32
    %25 = vector.shape_cast %24 : vector<2x1x16x16xi1> to vector<2x1x16x16xi1>
    %26 = vector.broadcast %25 : vector<2x1x16x16xi1> to vector<2x2x16x16xi1>
    %27 = vector.broadcast %cst_10 : f32 to vector<2x2x16x16xf32>
    %28 = arith.select %26, %20, %27 : vector<2x2x16x16xi1>, vector<2x2x16x16xf32>
    %cst_11 = arith.constant dense<0xFF800000> : vector<2x2x16xf32>
    %29 = vector.multi_reduction <maximumf>, %28, %cst_11 [3] : vector<2x2x16x16xf32> to vector<2x2x16xf32>
    %30 = vector.shape_cast %29 : vector<2x2x16xf32> to vector<2x2x16x1xf32>
    %cst_12 = arith.constant -5.000000e+29 : f32
    %31 = vector.broadcast %cst_12 : f32 to vector<2x2x16x1xf32>
    %32 = arith.cmpf ogt, %30, %31 : vector<2x2x16x1xf32>
    %cst_13 = arith.constant 0.000000e+00 : f32
    %33 = vector.broadcast %cst_13 : f32 to vector<2x2x16x1xf32>
    %34 = arith.select %32, %30, %33 : vector<2x2x16x1xi1>, vector<2x2x16x1xf32>
    %35 = vector.broadcast %34 : vector<2x2x16x1xf32> to vector<2x2x16x16xf32>
    %36 = arith.subf %28, %35 : vector<2x2x16x16xf32>
    %37 = math.exp %36 : vector<2x2x16x16xf32>
    %cst_14 = arith.constant dense<0.000000e+00> : vector<2x2x16xf32>
    %38 = vector.multi_reduction <add>, %37, %cst_14 [3] : vector<2x2x16x16xf32> to vector<2x2x16xf32>
    %39 = vector.shape_cast %38 : vector<2x2x16xf32> to vector<2x2x16x1xf32>
    %cst_15 = arith.constant 0.000000e+00 : f32
    %40 = vector.broadcast %cst_15 : f32 to vector<2x2x16x1xf32>
    %41 = arith.cmpf ogt, %39, %40 : vector<2x2x16x1xf32>
    %cst_16 = arith.constant 1.000000e+00 : f32
    %42 = vector.broadcast %cst_16 : f32 to vector<2x2x16x1xf32>
    %43 = arith.select %41, %39, %42 : vector<2x2x16x1xi1>, vector<2x2x16x1xf32>
    %44 = tpu.reciprocal %43 : vector<2x2x16x1xf32> -> vector<2x2x16x1xf32>
    %45 = vector.extract_strided_slice %4 {offsets = [0, 0], sizes = [16, 4], strides = [1, 1]} : vector<16x16xf32> to vector<16x4xf32>
    %46 = vector.extract_strided_slice %37 {offsets = [0, 0, 0, 0], sizes = [1, 1, 16, 16], strides = [1, 1, 1, 1]} : vector<2x2x16x16xf32> to vector<1x1x16x16xf32>
    %47 = vector.shape_cast %46 : vector<1x1x16x16xf32> to vector<16x16xf32>
    %cst_17 = arith.constant dense<0.000000e+00> : vector<16x4xf32>
    %48 = tpu.matmul %47, %45, %cst_17 {dimension_numbers = #tpu.dot_dimension_numbers<[1], [0], [0], [1], [0, 0, 1, 1], [], []>} : vector<16x16xf32>, vector<16x4xf32>, vector<16x4xf32> -> vector<16x4xf32>
    %49 = vector.extract_strided_slice %44 {offsets = [0, 0, 0, 0], sizes = [1, 1, 16, 1], strides = [1, 1, 1, 1]} : vector<2x2x16x1xf32> to vector<1x1x16x1xf32>
    %50 = vector.shape_cast %49 : vector<1x1x16x1xf32> to vector<16x1xf32>
    %51 = vector.broadcast %50 : vector<16x1xf32> to vector<16x4xf32>
    %52 = arith.mulf %48, %51 : vector<16x4xf32>
    %53 = vector.extract_strided_slice %2 {offsets = [0, 0], sizes = [1, 4], strides = [1, 1]} : vector<1x24xf32> to vector<1x4xf32>
    %54 = vector.broadcast %53 : vector<1x4xf32> to vector<16x4xf32>
    %55 = arith.addf %52, %54 : vector<16x4xf32>
    %cst_18 = arith.constant 0.000000e+00 : f32
    %56 = vector.broadcast %cst_18 : f32 to vector<16x4xf32>
    %57 = arith.cmpf ogt, %55, %56 : vector<16x4xf32>
    %cst_19 = arith.constant 0.000000e+00 : f32
    %58 = vector.broadcast %cst_19 : f32 to vector<16x4xf32>
    %59 = arith.minimumf %55, %58 : vector<16x4xf32>
    %60 = math.exp %59 : vector<16x4xf32>
    %cst_20 = arith.constant 1.000000e+00 : f32
    %61 = vector.broadcast %cst_20 : f32 to vector<16x4xf32>
    %62 = arith.subf %60, %61 : vector<16x4xf32>
    %63 = arith.select %57, %55, %62 : vector<16x4xi1>, vector<16x4xf32>
    %c0_21 = arith.constant 0 : index
    %c0_22 = arith.constant 0 : index
    %64 = vector.load %arg3[%c0_21, %c0_22] : memref<16x16xf32, #tpu.memory_space<vmem>>, vector<16x4xf32>
    tpu.vector_store %arg3[%c0_21, %c0_22], %63 {strides = array<i32>} : memref<16x16xf32, #tpu.memory_space<vmem>>, vector<16x4xf32>,
    %65 = vector.extract_strided_slice %4 {offsets = [0, 4], sizes = [16, 4], strides = [1, 1]} : vector<16x16xf32> to vector<16x4xf32>
    %66 = vector.extract_strided_slice %37 {offsets = [0, 1, 0, 0], sizes = [1, 1, 16, 16], strides = [1, 1, 1, 1]} : vector<2x2x16x16xf32> to vector<1x1x16x16xf32>
    %67 = vector.shape_cast %66 : vector<1x1x16x16xf32> to vector<16x16xf32>
    %cst_23 = arith.constant dense<0.000000e+00> : vector<16x4xf32>
    %68 = tpu.matmul %67, %65, %cst_23 {dimension_numbers = #tpu.dot_dimension_numbers<[1], [0], [0], [1], [0, 0, 1, 1], [], []>} : vector<16x16xf32>, vector<16x4xf32>, vector<16x4xf32> -> vector<16x4xf32>
    %69 = vector.extract_strided_slice %44 {offsets = [0, 1, 0, 0], sizes = [1, 1, 16, 1], strides = [1, 1, 1, 1]} : vector<2x2x16x1xf32> to vector<1x1x16x1xf32>
    %70 = vector.shape_cast %69 : vector<1x1x16x1xf32> to vector<16x1xf32>
    %71 = vector.broadcast %70 : vector<16x1xf32> to vector<16x4xf32>
    %72 = arith.mulf %68, %71 : vector<16x4xf32>
    %73 = vector.extract_strided_slice %2 {offsets = [0, 4], sizes = [1, 4], strides = [1, 1]} : vector<1x24xf32> to vector<1x4xf32>
    %74 = vector.broadcast %73 : vector<1x4xf32> to vector<16x4xf32>
    %75 = arith.addf %72, %74 : vector<16x4xf32>
    %cst_24 = arith.constant 0.000000e+00 : f32
    %76 = vector.broadcast %cst_24 : f32 to vector<16x4xf32>
    %77 = arith.cmpf ogt, %75, %76 : vector<16x4xf32>
    %cst_25 = arith.constant 0.000000e+00 : f32
    %78 = vector.broadcast %cst_25 : f32 to vector<16x4xf32>
    %79 = arith.minimumf %75, %78 : vector<16x4xf32>
    %80 = math.exp %79 : vector<16x4xf32>
    %cst_26 = arith.constant 1.000000e+00 : f32
    %81 = vector.broadcast %cst_26 : f32 to vector<16x4xf32>
    %82 = arith.subf %80, %81 : vector<16x4xf32>
    %83 = arith.select %77, %75, %82 : vector<16x4xi1>, vector<16x4xf32>
    %c0_27 = arith.constant 0 : index
    %c4 = arith.constant 4 : index
    %84 = vector.load %arg3[%c0_27, %c4] : memref<16x16xf32, #tpu.memory_space<vmem>>, vector<16x4xf32>
    tpu.vector_store %arg3[%c0_27, %c4], %83 {strides = array<i32>} : memref<16x16xf32, #tpu.memory_space<vmem>>, vector<16x4xf32>,
    %85 = vector.extract_strided_slice %4 {offsets = [0, 8], sizes = [16, 4], strides = [1, 1]} : vector<16x16xf32> to vector<16x4xf32>
    %86 = vector.extract_strided_slice %37 {offsets = [1, 0, 0, 0], sizes = [1, 1, 16, 16], strides = [1, 1, 1, 1]} : vector<2x2x16x16xf32> to vector<1x1x16x16xf32>
    %87 = vector.shape_cast %86 : vector<1x1x16x16xf32> to vector<16x16xf32>
    %cst_28 = arith.constant dense<0.000000e+00> : vector<16x4xf32>
    %88 = tpu.matmul %87, %85, %cst_28 {dimension_numbers = #tpu.dot_dimension_numbers<[1], [0], [0], [1], [0, 0, 1, 1], [], []>} : vector<16x16xf32>, vector<16x4xf32>, vector<16x4xf32> -> vector<16x4xf32>
    %89 = vector.extract_strided_slice %44 {offsets = [1, 0, 0, 0], sizes = [1, 1, 16, 1], strides = [1, 1, 1, 1]} : vector<2x2x16x1xf32> to vector<1x1x16x1xf32>
    %90 = vector.shape_cast %89 : vector<1x1x16x1xf32> to vector<16x1xf32>
    %91 = vector.broadcast %90 : vector<16x1xf32> to vector<16x4xf32>
    %92 = arith.mulf %88, %91 : vector<16x4xf32>
    %93 = vector.extract_strided_slice %2 {offsets = [0, 8], sizes = [1, 4], strides = [1, 1]} : vector<1x24xf32> to vector<1x4xf32>
    %94 = vector.broadcast %93 : vector<1x4xf32> to vector<16x4xf32>
    %95 = arith.addf %92, %94 : vector<16x4xf32>
    %cst_29 = arith.constant 0.000000e+00 : f32
    %96 = vector.broadcast %cst_29 : f32 to vector<16x4xf32>
    %97 = arith.cmpf ogt, %95, %96 : vector<16x4xf32>
    %cst_30 = arith.constant 0.000000e+00 : f32
    %98 = vector.broadcast %cst_30 : f32 to vector<16x4xf32>
    %99 = arith.minimumf %95, %98 : vector<16x4xf32>
    %100 = math.exp %99 : vector<16x4xf32>
    %cst_31 = arith.constant 1.000000e+00 : f32
    %101 = vector.broadcast %cst_31 : f32 to vector<16x4xf32>
    %102 = arith.subf %100, %101 : vector<16x4xf32>
    %103 = arith.select %97, %95, %102 : vector<16x4xi1>, vector<16x4xf32>
    %c0_32 = arith.constant 0 : index
    %c8_33 = arith.constant 8 : index
    %104 = vector.load %arg3[%c0_32, %c8_33] : memref<16x16xf32, #tpu.memory_space<vmem>>, vector<16x4xf32>
    tpu.vector_store %arg3[%c0_32, %c8_33], %103 {strides = array<i32>} : memref<16x16xf32, #tpu.memory_space<vmem>>, vector<16x4xf32>,
    %105 = vector.extract_strided_slice %4 {offsets = [0, 12], sizes = [16, 4], strides = [1, 1]} : vector<16x16xf32> to vector<16x4xf32>
    %106 = vector.extract_strided_slice %37 {offsets = [1, 1, 0, 0], sizes = [1, 1, 16, 16], strides = [1, 1, 1, 1]} : vector<2x2x16x16xf32> to vector<1x1x16x16xf32>
    %107 = vector.shape_cast %106 : vector<1x1x16x16xf32> to vector<16x16xf32>
    %cst_34 = arith.constant dense<0.000000e+00> : vector<16x4xf32>
    %108 = tpu.matmul %107, %105, %cst_34 {dimension_numbers = #tpu.dot_dimension_numbers<[1], [0], [0], [1], [0, 0, 1, 1], [], []>} : vector<16x16xf32>, vector<16x4xf32>, vector<16x4xf32> -> vector<16x4xf32>
    %109 = vector.extract_strided_slice %44 {offsets = [1, 1, 0, 0], sizes = [1, 1, 16, 1], strides = [1, 1, 1, 1]} : vector<2x2x16x1xf32> to vector<1x1x16x1xf32>
    %110 = vector.shape_cast %109 : vector<1x1x16x1xf32> to vector<16x1xf32>
    %111 = vector.broadcast %110 : vector<16x1xf32> to vector<16x4xf32>
    %112 = arith.mulf %108, %111 : vector<16x4xf32>
    %113 = vector.extract_strided_slice %2 {offsets = [0, 12], sizes = [1, 4], strides = [1, 1]} : vector<1x24xf32> to vector<1x4xf32>
    %114 = vector.broadcast %113 : vector<1x4xf32> to vector<16x4xf32>
    %115 = arith.addf %112, %114 : vector<16x4xf32>
    %cst_35 = arith.constant 0.000000e+00 : f32
    %116 = vector.broadcast %cst_35 : f32 to vector<16x4xf32>
    %117 = arith.cmpf ogt, %115, %116 : vector<16x4xf32>
    %cst_36 = arith.constant 0.000000e+00 : f32
    %118 = vector.broadcast %cst_36 : f32 to vector<16x4xf32>
    %119 = arith.minimumf %115, %118 : vector<16x4xf32>
    %120 = math.exp %119 : vector<16x4xf32>
    %cst_37 = arith.constant 1.000000e+00 : f32
    %121 = vector.broadcast %cst_37 : f32 to vector<16x4xf32>
    %122 = arith.subf %120, %121 : vector<16x4xf32>
    %123 = arith.select %117, %115, %122 : vector<16x4xi1>, vector<16x4xf32>
    %c0_38 = arith.constant 0 : index
    %c12 = arith.constant 12 : index
    %124 = vector.load %arg3[%c0_38, %c12] : memref<16x16xf32, #tpu.memory_space<vmem>>, vector<16x4xf32>
    tpu.vector_store %arg3[%c0_38, %c12], %123 {strides = array<i32>} : memref<16x16xf32, #tpu.memory_space<vmem>>, vector<16x4xf32>,
    return
  }
}

</mosaic_0001>

<llo_original>
// kernel: tpu_custom_call.1
$region0: #{tpu_custom_call.1}
  #allocation0 [shape = 'u32[]', space=smem, size = 0x4, offset = 0x4, fixed_abs, tag = 'smem constant byte address 0x4 - core index']
  #allocation1 [shape = 'u32[144,128]{1,0:T(1,128)}', space=vmem, size = 0x12000, scoped, tag = 'internal scratch']
  %s0 = inlined_call_operand.vmem [shape: f32[16,8], index: 0, kind: input, shape index: {}]
  %s1 = inlined_call_operand.vmem [shape: f32[9,24], index: 1, kind: input, shape index: {}]
  %s2 = inlined_call_operand.hbm [shape: f32[2,16,16], index: 2, kind: input, shape index: {}]
  %s3 = inlined_call_operand.hbm [shape: f32[16,16], index: 3, kind: output, shape index: {}]
  %s4 = sld [smem:[#allocation0]]
  $region26: #{tpu_custom_call.1} parent=0
    _
  %s6 = ssub.s32 1, %s4
  %s7 = scalar_select 0, %s6, %s4
  $region1: #{tpu_custom_call.1} parent=0
    #allocation2 [shape = 'u8[16384]{0}', space=vmem, size = 0x4000, scoped, tag = 'input window, operand 2, single buffered']
    #allocation3 [shape = 's32[1]{0}', space=sflag, size = 0x4, scoped, tag = 'scoped memory for tpu_custom_call.1']
    #allocation4 [shape = 's32[1]{0}', space=sflag, size = 0x4, scoped, tag = 'scoped memory for tpu_custom_call.1']
    #allocation5 [shape = 'u8[8192]{0}', space=vmem, size = 0x2000, scoped, tag = 'output window, operand 0, single buffered']
    %8 = vsyncpa [#allocation3], 0
    %9 = vsyncpa [#allocation4], 0
    // Predicated region
    $region2: #{tpu_custom_call.1} parent=1 // pred_check
      _
    $region3: #{tpu_custom_call.1} parent=1 // pred_check_branch
      %11 = sbr.rel (0) target = $region5
    $region4: #{tpu_custom_call.1} parent=1 // pred_region
      _
    $region5: #{tpu_custom_call.1} parent=1 // pred_fallthru
      _
    // Predicated region
    $region6: #{tpu_custom_call.1} parent=1 // pred_check
      _
    $region7: #{tpu_custom_call.1} parent=1 // pred_check_branch
      %13 = sbr.rel (0) target = $region9
    $region8: #{tpu_custom_call.1} parent=1 // pred_region
      _
    $region9: #{tpu_custom_call.1} parent=1 // pred_fallthru
      _
    // Predicated region
    $region10: #{tpu_custom_call.1} parent=1 // pred_check
      _
    $region11: #{tpu_custom_call.1} parent=1 // pred_check_branch
      %15 = sbr.rel (0) target = $region13
    $region12: #{tpu_custom_call.1} parent=1 // pred_region
      %s17 = ssub.s32 512, 512
      %18 = vsyncadd [#allocation3], %s17
      %s19 = sshll.u32 [#allocation2], 4
      %s20 = int_to_ptr.vmem [resolvable:$true] %s19
      %25 = dma.hbm_to_vmem [thread:$0]  %s2, 512, %s20, [#allocation3], 128, 128, 8
    $region13: #{tpu_custom_call.1} parent=1 // pred_fallthru
      _
    // Predicated region
    $region14: #{tpu_custom_call.1} parent=1 // pred_check
      _
    $region15: #{tpu_custom_call.1} parent=1 // pred_check_branch
      %27 = sbr.rel (0) target = $region17
    $region16: #{tpu_custom_call.1} parent=1 // pred_region
      %28 = dma.done [#allocation3], 512
    $region17: #{tpu_custom_call.1} parent=1 // pred_fallthru
      _
    %v29 = vld [vmem:[%s0] sm:$0xff]
    %v30 = vld [vmem:[%s0 + $0x8] sm:$0xff]
    %v31 = vld [vmem:[%s1] sm:$0xff]
    %v32 = vld [vmem:[%s1 + $0x8] sm:$0x1]
    %vm33 = vcmask 64512
    %v35 = vsel %vm33, %v29, 0
    %v38 = vsel %vm33, %v30, 0
    %40 = vmatprep.subr.mxu0 0.0
    %41 = vmatpush1.msra.mxu0 %v31
    %42 = vmatprep.subr.mxu0 0.0
    %43 = vmatpush1.msra.mxu0 0.0
    %44 = vmatprep.subr.mxu0 0.0
    %45 = vmatpush1.msra.mxu0 0.0
    %46 = vmatprep.subr.mxu0 0.0
    %47 = vmatpush1.msra.mxu0 0.0
    %48 = vmatprep.subr.mxu0 0.0
    %49 = vmatpush1.msra.mxu0 0.0
    %50 = vmatprep.subr.mxu0 0.0
    %51 = vmatpush1.msra.mxu0 0.0
    %52 = vmatprep.subr.mxu0 0.0
    %53 = vmatpush1.msra.mxu0 0.0
    %54 = vmatprep.subr.mxu0 0.0
    %55 = vmatpush1.msra.mxu0 0.0
    %56 = vmatprep.subr.mxu0 0.0
    %57 = vmatpush1.msra.mxu0 0.0
    %58 = vmatprep.subr.mxu0 0.0
    %59 = vmatpush1.msra.mxu0 0.0
    %60 = vmatprep.subr.mxu0 0.0
    %61 = vmatpush1.msra.mxu0 0.0
    %62 = vmatprep.subr.mxu0 0.0
    %63 = vmatpush1.msra.mxu0 0.0
    %64 = vmatprep.subr.mxu0 0.0
    %65 = vmatpush1.msra.mxu0 0.0
    %66 = vmatprep.subr.mxu0 0.0
    %67 = vmatpush1.msra.mxu0 0.0
    %68 = vmatprep.subr.mxu0 0.0
    %69 = vmatpush1.msra.mxu0 0.0
    %70 = vmatprep.subr.mxu0 0.0
    %71 = vmatpush1.msra.mxu0 0.0
    %72 = vmatprep.subr.mxu0 0.0
    %73 = vmatpush1.msra.mxu0 0.0
    %74 = vmatprep.subr.mxu0 0.0
    %75 = vmatpush1.msra.mxu0 0.0
    %76 = vmatprep.subr.mxu0 0.0
    %77 = vmatpush1.msra.mxu0 0.0
    %78 = vmatprep.subr.mxu0 0.0
    %79 = vmatpush1.msra.mxu0 0.0
    %80 = vmatprep.subr.mxu0 0.0
    %81 = vmatpush1.msra.mxu0 0.0
    %82 = vmatprep.subr.mxu0 0.0
    %83 = vmatpush1.msra.mxu0 0.0
    %84 = vmatprep.subr.mxu0 0.0
    %85 = vmatpush1.msra.mxu0 0.0
    %86 = vmatprep.subr.mxu0 0.0
    %87 = vmatpush1.msra.mxu0 0.0
    %88 = vmatprep.subr.mxu0 0.0
    %89 = vmatpush1.msra.mxu0 0.0
    %90 = vmatprep.subr.mxu0 0.0
    %91 = vmatpush1.msra.mxu0 0.0
    %92 = vmatprep.subr.mxu0 0.0
    %93 = vmatpush1.msra.mxu0 0.0
    %94 = vmatprep.subr.mxu0 0.0
    %95 = vmatpush1.msra.mxu0 0.0
    %96 = vmatprep.subr.mxu0 0.0
    %97 = vmatpush1.msra.mxu0 0.0
    %98 = vmatprep.subr.mxu0 0.0
    %99 = vmatpush1.msra.mxu0 0.0
    %100 = vmatprep.subr.mxu0 0.0
    %101 = vmatpush1.msra.mxu0 0.0
    %102 = vmatprep.subr.mxu0 0.0
    %103 = vmatpush1.msra.mxu0 0.0
    %104 = vmatprep.mubr.f32.mxu0 0.0
    %105 = vmatmul.mubr.f32.gmra.mrb[0].mxu0 %v35
    %v106 = vpop.f32.mrb[0].mxu0
    %v107 = vadd.f32 0.0, %v106
    %v108 = vpop.f32.mrb[0].mxu0
    %109 = vmatprep.mubr.f32.mxu0 0.0
    %110 = vmatmul.mubr.f32.gmra.mrb[0].mxu0 %v38
    %v111 = vpop.f32.mrb[0].mxu0
    %v112 = vadd.f32 0.0, %v111
    %v113 = vpop.f32.mrb[0].mxu0
    %114 = vdwg.mxu0
    %117 = vrot.lane.b32.xlu0 %v107, 112
    %v118 = vpop.permute.xlu0 %117
    %119 = vrot.lane.b32.xlu0 %v112, 112
    %v120 = vpop.permute.xlu0 %119
    %123 = vxpose.xlu0.b32.start [1/16] %v118, 128
    %124 = vxpose.xlu0.b32.cont [2/16] %v120, 128
    %125 = vxpose.xlu0.b32.cont [3/16] 0.0, 128
    %126 = vxpose.xlu0.b32.cont [4/16] 0.0, 128
    %127 = vxpose.xlu0.b32.cont [5/16] 0.0, 128
    %128 = vxpose.xlu0.b32.cont [6/16] 0.0, 128
    %129 = vxpose.xlu0.b32.cont [7/16] 0.0, 128
    %130 = vxpose.xlu0.b32.cont [8/16] 0.0, 128
    %131 = vxpose.xlu0.b32.cont [9/16] 0.0, 128
    %132 = vxpose.xlu0.b32.cont [10/16] 0.0, 128
    %133 = vxpose.xlu0.b32.cont [11/16] 0.0, 128
    %134 = vxpose.xlu0.b32.cont [12/16] 0.0, 128
    %135 = vxpose.xlu0.b32.cont [13/16] 0.0, 128
    %136 = vxpose.xlu0.b32.cont [14/16] 0.0, 128
    %137 = vxpose.xlu0.b32.cont [15/16] 0.0, 128
    %138 = vxpose.xlu0.b32.end [16/16] 0.0, 128
    %v139 = vpop.trf.xlu0
    %v140 = vpop.trf.xlu0
    %v141 = vpop.trf.xlu0
    %v142 = vpop.trf.xlu0
    %v143 = vpop.trf.xlu0
    %v144 = vpop.trf.xlu0
    %v145 = vpop.trf.xlu0
    %v146 = vpop.trf.xlu0
    %v147 = vpop.trf.xlu0
    %v148 = vpop.trf.xlu0
    %v149 = vpop.trf.xlu0
    %v150 = vpop.trf.xlu0
    %v151 = vpop.trf.xlu0
    %v152 = vpop.trf.xlu0
    %v153 = vpop.trf.xlu0
    %v154 = vpop.trf.xlu0
    %v157 = vunpack.c.l.s4 1966171168
    %v158 = vunpack.c.0.s8 %v157
    %v159 = vlaneseq
    %v160 = vshrl.u32 %v159, 7
    %v161 = vsub.s32 %v158, %v160
    %v162 = vrot.slane %v139, %v161
    %v163 = vcombine.high %v162, %v162
    %v165 = vunpack.c.l.s4 1966171168
    %v166 = vunpack.c.0.s8 %v165
    %v167 = vlaneseq
    %v168 = vshrl.u32 %v167, 7
    %v169 = vsub.s32 %v166, %v168
    %v170 = vrot.slane %v162, %v169
    %v172 = vunpack.c.l.s4 1966171168
    %v173 = vunpack.c.0.s8 %v172
    %v174 = vlaneseq
    %v175 = vshrl.u32 %v174, 7
    %v176 = vsub.s32 %v173, %v175
    %v177 = vrot.slane %v163, %v176
    %v178 = vcombine.high %v170, %v170
    %v179 = vcombine.high %v177, %v177
    %v180 = vlaneseq
    %v181 = vshrl.u32 %v180, 7
    %v182 = vsub.s32 4, %v181
    %v183 = vrot.slane %v139, %v182
    %185 = vbcast.lane.b32.xlu0 %v183, 256
    %v186 = vpop.permute.xlu0 %185
    %s188 = sor.u32 256, 8
    %189 = vbcast.lane.b32.xlu0 %v183, %s188
    %v190 = vpop.permute.xlu0 %189
    %v191 = vlaneseq
    %v192 = vshrl.u32 %v191, 7
    %v193 = vsub.s32 5, %v192
    %v194 = vrot.slane %v139, %v193
    %196 = vbcast.lane.b32.xlu0 %v194, 256
    %v197 = vpop.permute.xlu0 %196
    %s199 = sor.u32 256, 8
    %200 = vbcast.lane.b32.xlu0 %v194, %s199
    %v201 = vpop.permute.xlu0 %200
    %v202 = vlaneseq
    %v203 = vshrl.u32 %v202, 7
    %v204 = vsub.s32 6, %v203
    %v205 = vrot.slane %v139, %v204
    %207 = vbcast.lane.b32.xlu0 %v205, 256
    %v208 = vpop.permute.xlu0 %207
    %s210 = sor.u32 256, 8
    %211 = vbcast.lane.b32.xlu0 %v205, %s210
    %v212 = vpop.permute.xlu0 %211
    %v213 = vlaneseq
    %v214 = vshrl.u32 %v213, 7
    %v215 = vsub.s32 7, %v214
    %v216 = vrot.slane %v139, %v215
    %218 = vbcast.lane.b32.xlu0 %v216, 256
    %v219 = vpop.permute.xlu0 %218
    %s221 = sor.u32 256, 8
    %222 = vbcast.lane.b32.xlu0 %v216, %s221
    %v223 = vpop.permute.xlu0 %222
    %v224 = vlaneseq
    %v225 = vshrl.u32 %v224, 7
    %v226 = vsub.s32 0, %v225
    %v227 = vrot.slane %v170, %v226
    %v228 = vlaneseq
    %v229 = vshrl.u32 %v228, 7
    %v230 = vsub.s32 0, %v229
    %v231 = vrot.slane %v177, %v230
    %v232 = vlaneseq
    %v233 = vshrl.u32 %v232, 7
    %v234 = vsub.s32 0, %v233
    %v235 = vrot.slane %v178, %v234
    %v236 = vlaneseq
    %v237 = vshrl.u32 %v236, 7
    %v238 = vsub.s32 0, %v237
    %v239 = vrot.slane %v179, %v238
    %v244 = vadd.f32 %v227, %v186
    %v245 = vadd.f32 %v227, %v190
    %v246 = vadd.f32 %v231, %v197
    %v247 = vadd.f32 %v231, %v201
    %v248 = vadd.f32 %v235, %v208
    %v249 = vadd.f32 %v235, %v212
    %v250 = vadd.f32 %v239, %v219
    %v251 = vadd.f32 %v239, %v223
    %vm252 = vcmp.gt.f32.partialorder %v244, 0.0
    %vm253 = vcmp.gt.f32.partialorder %v245, 0.0
    %vm254 = vcmp.gt.f32.partialorder %v246, 0.0
    %vm255 = vcmp.gt.f32.partialorder %v247, 0.0
    %vm256 = vcmp.gt.f32.partialorder %v248, 0.0
    %vm257 = vcmp.gt.f32.partialorder %v249, 0.0
    %vm258 = vcmp.gt.f32.partialorder %v250, 0.0
    %vm259 = vcmp.gt.f32.partialorder %v251, 0.0
    %v260 = vmul.f32 %v244, 0.2
    %v261 = vmul.f32 %v245, 0.2
    %v262 = vmul.f32 %v246, 0.2
    %v263 = vmul.f32 %v247, 0.2
    %v264 = vmul.f32 %v248, 0.2
    %v265 = vmul.f32 %v249, 0.2
    %v266 = vmul.f32 %v250, 0.2
    %v267 = vmul.f32 %v251, 0.2
    %v268 = vsel %vm252, %v244, %v260
    %v269 = vsel %vm253, %v245, %v261
    %v270 = vsel %vm254, %v246, %v262
    %v271 = vsel %vm255, %v247, %v263
    %v272 = vsel %vm256, %v248, %v264
    %v273 = vsel %vm257, %v249, %v265
    %v274 = vsel %vm258, %v250, %v266
    %v275 = vsel %vm259, %v251, %v267
    %v276 = vld [vmem:[#allocation2] sm:$0xff]
    %v277 = vld [vmem:[#allocation2 + $0x8] sm:$0xff]
    %v278 = vld [vmem:[#allocation2 + $0x10] sm:$0xff]
    %v279 = vld [vmem:[#allocation2 + $0x18] sm:$0xff]
    %vm280 = vcmp.gt.f32.partialorder %v276, 0.0
    %vm281 = vcmp.gt.f32.partialorder %v277, 0.0
    %vm282 = vcmp.gt.f32.partialorder %v278, 0.0
    %vm283 = vcmp.gt.f32.partialorder %v279, 0.0
    %v284 = vsel %vm280, 1, 0
    %v285 = vsel %vm281, 1, 0
    %v286 = vsel %vm282, 1, 0
    %v287 = vsel %vm283, 1, 0
    %vm288 = vcmp.eq.s32.totalorder %v284, 1
    %vm289 = vcmp.eq.s32.totalorder %v285, 1
    %vm290 = vcmp.eq.s32.totalorder %v286, 1
    %vm291 = vcmp.eq.s32.totalorder %v287, 1
    %v292 = vsel %vm288, %v268, -1e+30
    %v293 = vsel %vm289, %v269, -1e+30
    %v294 = vsel %vm288, %v270, -1e+30
    %v295 = vsel %vm289, %v271, -1e+30
    %v296 = vsel %vm290, %v272, -1e+30
    %v297 = vsel %vm291, %v273, -1e+30
    %v298 = vsel %vm290, %v274, -1e+30
    %v299 = vsel %vm291, %v275, -1e+30
    %vm300 = vcmask 130048
    %v301 = vsel %vm300, %v292, -inf
    %302 = vmax.xlane.f32.xlu0 %v301
    %v303 = vpop.xlane.xlu0 %302
    %v304 = vsel %vm300, %v293, -inf
    %305 = vmax.xlane.f32.xlu0 %v304
    %v306 = vpop.xlane.xlu0 %305
    %v307 = vsel %vm300, %v294, -inf
    %308 = vmax.xlane.f32.xlu0 %v307
    %v309 = vpop.xlane.xlu0 %308
    %v310 = vsel %vm300, %v295, -inf
    %311 = vmax.xlane.f32.xlu0 %v310
    %v312 = vpop.xlane.xlu0 %311
    %v313 = vsel %vm300, %v296, -inf
    %314 = vmax.xlane.f32.xlu0 %v313
    %v315 = vpop.xlane.xlu0 %314
    %v316 = vsel %vm300, %v297, -inf
    %317 = vmax.xlane.f32.xlu0 %v316
    %v318 = vpop.xlane.xlu0 %317
    %v319 = vsel %vm300, %v298, -inf
    %320 = vmax.xlane.f32.xlu0 %v319
    %v321 = vpop.xlane.xlu0 %320
    %v322 = vsel %vm300, %v299, -inf
    %323 = vmax.xlane.f32.xlu0 %v322
    %v324 = vpop.xlane.xlu0 %323
    %vm325 = vcmp.gt.f32.partialorder %v303, -5e+29
    %vm326 = vcmp.gt.f32.partialorder %v306, -5e+29
    %vm327 = vcmp.gt.f32.partialorder %v309, -5e+29
    %vm328 = vcmp.gt.f32.partialorder %v312, -5e+29
    %vm329 = vcmp.gt.f32.partialorder %v315, -5e+29
    %vm330 = vcmp.gt.f32.partialorder %v318, -5e+29
    %vm331 = vcmp.gt.f32.partialorder %v321, -5e+29
    %vm332 = vcmp.gt.f32.partialorder %v324, -5e+29
    %v333 = vsel %vm325, %v303, 0.0
    %v334 = vsel %vm326, %v306, 0.0
    %v335 = vsel %vm327, %v309, 0.0
    %v336 = vsel %vm328, %v312, 0.0
    %v337 = vsel %vm329, %v315, 0.0
    %v338 = vsel %vm330, %v318, 0.0
    %v339 = vsel %vm331, %v321, 0.0
    %v340 = vsel %vm332, %v324, 0.0
    %v341 = vsub.f32 %v292, %v333
    %v342 = vsub.f32 %v293, %v334
    %v343 = vsub.f32 %v294, %v335
    %v344 = vsub.f32 %v295, %v336
    %v345 = vsub.f32 %v296, %v337
    %v346 = vsub.f32 %v297, %v338
    %v347 = vsub.f32 %v298, %v339
    %v348 = vsub.f32 %v299, %v340
    %v349 = vmul.f32 %v341, 1.442695
    %v350 = vpow.pop %v349
    %v351 = vmul.f32 %v342, 1.442695
    %v352 = vpow.pop %v351
    %v353 = vmul.f32 %v343, 1.442695
    %v354 = vpow.pop %v353
    %v355 = vmul.f32 %v344, 1.442695
    %v356 = vpow.pop %v355
    %v357 = vmul.f32 %v345, 1.442695
    %v358 = vpow.pop %v357
    %v359 = vmul.f32 %v346, 1.442695
    %v360 = vpow.pop %v359
    %v361 = vmul.f32 %v347, 1.442695
    %v362 = vpow.pop %v361
    %v363 = vmul.f32 %v348, 1.442695
    %v364 = vpow.pop %v363
    %v365 = vsel %vm300, %v350, 0.0
    %366 = vadd.xlane.f32.xlu0 %v365
    %v367 = vpop.xlane.xlu0 %366
    %v368 = vsel %vm300, %v352, 0.0
    %369 = vadd.xlane.f32.xlu0 %v368
    %v370 = vpop.xlane.xlu0 %369
    %v371 = vsel %vm300, %v354, 0.0
    %372 = vadd.xlane.f32.xlu0 %v371
    %v373 = vpop.xlane.xlu0 %372
    %v374 = vsel %vm300, %v356, 0.0
    %375 = vadd.xlane.f32.xlu0 %v374
    %v376 = vpop.xlane.xlu0 %375
    %v377 = vsel %vm300, %v358, 0.0
    %378 = vadd.xlane.f32.xlu0 %v377
    %v379 = vpop.xlane.xlu0 %378
    %v380 = vsel %vm300, %v360, 0.0
    %381 = vadd.xlane.f32.xlu0 %v380
    %v382 = vpop.xlane.xlu0 %381
    %v383 = vsel %vm300, %v362, 0.0
    %384 = vadd.xlane.f32.xlu0 %v383
    %v385 = vpop.xlane.xlu0 %384
    %v386 = vsel %vm300, %v364, 0.0
    %387 = vadd.xlane.f32.xlu0 %v386
    %v388 = vpop.xlane.xlu0 %387
    %vm389 = vcmp.gt.f32.partialorder %v367, 0.0
    %vm390 = vcmp.gt.f32.partialorder %v370, 0.0
    %vm391 = vcmp.gt.f32.partialorder %v373, 0.0
    %vm392 = vcmp.gt.f32.partialorder %v376, 0.0
    %vm393 = vcmp.gt.f32.partialorder %v379, 0.0
    %vm394 = vcmp.gt.f32.partialorder %v382, 0.0
    %vm395 = vcmp.gt.f32.partialorder %v385, 0.0
    %vm396 = vcmp.gt.f32.partialorder %v388, 0.0
    %v397 = vsel %vm389, %v367, 1.0
    %v398 = vsel %vm390, %v370, 1.0
    %v399 = vsel %vm391, %v373, 1.0
    %v400 = vsel %vm392, %v376, 1.0
    %v401 = vsel %vm393, %v379, 1.0
    %v402 = vsel %vm394, %v382, 1.0
    %v403 = vsel %vm395, %v385, 1.0
    %v404 = vsel %vm396, %v388, 1.0
    %v405 = vrcp.pop %v397
    %v406 = vrcp.pop %v398
    %v407 = vrcp.pop %v399
    %v408 = vrcp.pop %v400
    %v409 = vrcp.pop %v401
    %v410 = vrcp.pop %v402
    %v411 = vrcp.pop %v403
    %v412 = vrcp.pop %v404
    %v414 = vsel %vm300, %v350, 0
    %v417 = vsel %vm300, %v352, 0
    %419 = vmatprep.subr.mxu0 0.0
    %420 = vmatpush1.msra.mxu0 %v107
    %421 = vmatprep.subr.mxu0 0.0
    %422 = vmatpush1.msra.mxu0 %v112
    %423 = vmatprep.subr.mxu0 0.0
    %424 = vmatpush1.msra.mxu0 0.0
    %425 = vmatprep.subr.mxu0 0.0
    %426 = vmatpush1.msra.mxu0 0.0
    %427 = vmatprep.subr.mxu0 0.0
    %428 = vmatpush1.msra.mxu0 0.0
    %429 = vmatprep.subr.mxu0 0.0
    %430 = vmatpush1.msra.mxu0 0.0
    %431 = vmatprep.subr.mxu0 0.0
    %432 = vmatpush1.msra.mxu0 0.0
    %433 = vmatprep.subr.mxu0 0.0
    %434 = vmatpush1.msra.mxu0 0.0
    %435 = vmatprep.subr.mxu0 0.0
    %436 = vmatpush1.msra.mxu0 0.0
    %437 = vmatprep.subr.mxu0 0.0
    %438 = vmatpush1.msra.mxu0 0.0
    %439 = vmatprep.subr.mxu0 0.0
    %440 = vmatpush1.msra.mxu0 0.0
    %441 = vmatprep.subr.mxu0 0.0
    %442 = vmatpush1.msra.mxu0 0.0
    %443 = vmatprep.subr.mxu0 0.0
    %444 = vmatpush1.msra.mxu0 0.0
    %445 = vmatprep.subr.mxu0 0.0
    %446 = vmatpush1.msra.mxu0 0.0
    %447 = vmatprep.subr.mxu0 0.0
    %448 = vmatpush1.msra.mxu0 0.0
    %449 = vmatprep.subr.mxu0 0.0
    %450 = vmatpush1.msra.mxu0 0.0
    %451 = vmatprep.subr.mxu0 0.0
    %452 = vmatpush1.msra.mxu0 0.0
    %453 = vmatprep.subr.mxu0 0.0
    %454 = vmatpush1.msra.mxu0 0.0
    %455 = vmatprep.subr.mxu0 0.0
    %456 = vmatpush1.msra.mxu0 0.0
    %457 = vmatprep.subr.mxu0 0.0
    %458 = vmatpush1.msra.mxu0 0.0
    %459 = vmatprep.subr.mxu0 0.0
    %460 = vmatpush1.msra.mxu0 0.0
    %461 = vmatprep.subr.mxu0 0.0
    %462 = vmatpush1.msra.mxu0 0.0
    %463 = vmatprep.subr.mxu0 0.0
    %464 = vmatpush1.msra.mxu0 0.0
    %465 = vmatprep.subr.mxu0 0.0
    %466 = vmatpush1.msra.mxu0 0.0
    %467 = vmatprep.subr.mxu0 0.0
    %468 = vmatpush1.msra.mxu0 0.0
    %469 = vmatprep.subr.mxu0 0.0
    %470 = vmatpush1.msra.mxu0 0.0
    %471 = vmatprep.subr.mxu0 0.0
    %472 = vmatpush1.msra.mxu0 0.0
    %473 = vmatprep.subr.mxu0 0.0
    %474 = vmatpush1.msra.mxu0 0.0
    %475 = vmatprep.subr.mxu0 0.0
    %476 = vmatpush1.msra.mxu0 0.0
    %477 = vmatprep.subr.mxu0 0.0
    %478 = vmatpush1.msra.mxu0 0.0
    %479 = vmatprep.subr.mxu0 0.0
    %480 = vmatpush1.msra.mxu0 0.0
    %481 = vmatprep.subr.mxu0 0.0
    %482 = vmatpush1.msra.mxu0 0.0
    %483 = vmatprep.mubr.f32.mxu0 0.0
    %484 = vmatmul.mubr.f32.gmra.mrb[0].mxu0 %v414
    %v485 = vpop.f32.mrb[0].mxu0
    %v486 = vadd.f32 0.0, %v485
    %v487 = vpop.f32.mrb[0].mxu0
    %488 = vmatprep.mubr.f32.mxu0 0.0
    %489 = vmatmul.mubr.f32.gmra.mrb[0].mxu0 %v417
    %v490 = vpop.f32.mrb[0].mxu0
    %v491 = vadd.f32 0.0, %v490
    %v492 = vpop.f32.mrb[0].mxu0
    %493 = vdwg.mxu0
    %v494 = vmul.f32 %v486, %v405
    %v495 = vmul.f32 %v491, %v406
    %v496 = vlaneseq
    %v497 = vshrl.u32 %v496, 7
    %v498 = vsub.s32 0, %v497
    %v499 = vrot.slane %v32, %v498
    %v500 = vadd.f32 %v494, %v499
    %v501 = vadd.f32 %v495, %v499
    %vm502 = vcmp.gt.f32.partialorder %v500, 0.0
    %vm503 = vcmp.gt.f32.partialorder %v501, 0.0
    %v504 = vmin.f32 %v500, 0.0
    %v505 = vmin.f32 %v501, 0.0
    %v506 = vmul.f32 %v504, 1.442695
    %v507 = vpow.pop %v506
    %v508 = vmul.f32 %v505, 1.442695
    %v509 = vpow.pop %v508
    %v510 = vsub.f32 %v507, 1.0
    %v511 = vsub.f32 %v509, 1.0
    %v512 = vsel %vm502, %v500, %v510
    %v513 = vsel %vm503, %v501, %v511
    %vm514 = vcmask 31744
    %515 = vst.msk [vmem:[#allocation5] sm:$0xff] %vm514, %v512
    %516 = vst.msk [vmem:[#allocation5 + $0x8] sm:$0xff] %vm514, %v513
    %517 = vrot.lane.b32.xlu0 %v107, 124
    %v518 = vpop.permute.xlu0 %517
    %519 = vrot.lane.b32.xlu0 %v112, 124
    %v520 = vpop.permute.xlu0 %519
    %v524 = vsel %vm300, %v354, 0
    %v527 = vsel %vm300, %v356, 0
    %529 = vmatprep.subr.mxu0 0.0
    %530 = vmatpush1.msra.mxu0 %v518
    %531 = vmatprep.subr.mxu0 0.0
    %532 = vmatpush1.msra.mxu0 %v520
    %533 = vmatprep.subr.mxu0 0.0
    %534 = vmatpush1.msra.mxu0 0.0
    %535 = vmatprep.subr.mxu0 0.0
    %536 = vmatpush1.msra.mxu0 0.0
    %537 = vmatprep.subr.mxu0 0.0
    %538 = vmatpush1.msra.mxu0 0.0
    %539 = vmatprep.subr.mxu0 0.0
    %540 = vmatpush1.msra.mxu0 0.0
    %541 = vmatprep.subr.mxu0 0.0
    %542 = vmatpush1.msra.mxu0 0.0
    %543 = vmatprep.subr.mxu0 0.0
    %544 = vmatpush1.msra.mxu0 0.0
    %545 = vmatprep.subr.mxu0 0.0
    %546 = vmatpush1.msra.mxu0 0.0
    %547 = vmatprep.subr.mxu0 0.0
    %548 = vmatpush1.msra.mxu0 0.0
    %549 = vmatprep.subr.mxu0 0.0
    %550 = vmatpush1.msra.mxu0 0.0
    %551 = vmatprep.subr.mxu0 0.0
    %552 = vmatpush1.msra.mxu0 0.0
    %553 = vmatprep.subr.mxu0 0.0
    %554 = vmatpush1.msra.mxu0 0.0
    %555 = vmatprep.subr.mxu0 0.0
    %556 = vmatpush1.msra.mxu0 0.0
    %557 = vmatprep.subr.mxu0 0.0
    %558 = vmatpush1.msra.mxu0 0.0
    %559 = vmatprep.subr.mxu0 0.0
    %560 = vmatpush1.msra.mxu0 0.0
    %561 = vmatprep.subr.mxu0 0.0
    %562 = vmatpush1.msra.mxu0 0.0
    %563 = vmatprep.subr.mxu0 0.0
    %564 = vmatpush1.msra.mxu0 0.0
    %565 = vmatprep.subr.mxu0 0.0
    %566 = vmatpush1.msra.mxu0 0.0
    %567 = vmatprep.subr.mxu0 0.0
    %568 = vmatpush1.msra.mxu0 0.0
    %569 = vmatprep.subr.mxu0 0.0
    %570 = vmatpush1.msra.mxu0 0.0
    %571 = vmatprep.subr.mxu0 0.0
    %572 = vmatpush1.msra.mxu0 0.0
    %573 = vmatprep.subr.mxu0 0.0
    %574 = vmatpush1.msra.mxu0 0.0
    %575 = vmatprep.subr.mxu0 0.0
    %576 = vmatpush1.msra.mxu0 0.0
    %577 = vmatprep.subr.mxu0 0.0
    %578 = vmatpush1.msra.mxu0 0.0
    %579 = vmatprep.subr.mxu0 0.0
    %580 = vmatpush1.msra.mxu0 0.0
    %581 = vmatprep.subr.mxu0 0.0
    %582 = vmatpush1.msra.mxu0 0.0
    %583 = vmatprep.subr.mxu0 0.0
    %584 = vmatpush1.msra.mxu0 0.0
    %585 = vmatprep.subr.mxu0 0.0
    %586 = vmatpush1.msra.mxu0 0.0
    %587 = vmatprep.subr.mxu0 0.0
    %588 = vmatpush1.msra.mxu0 0.0
    %589 = vmatprep.subr.mxu0 0.0
    %590 = vmatpush1.msra.mxu0 0.0
    %591 = vmatprep.subr.mxu0 0.0
    %592 = vmatpush1.msra.mxu0 0.0
    %593 = vmatprep.mubr.f32.mxu0 0.0
    %594 = vmatmul.mubr.f32.gmra.mrb[0].mxu0 %v524
    %v595 = vpop.f32.mrb[0].mxu0
    %v596 = vadd.f32 0.0, %v595
    %v597 = vpop.f32.mrb[0].mxu0
    %598 = vmatprep.mubr.f32.mxu0 0.0
    %599 = vmatmul.mubr.f32.gmra.mrb[0].mxu0 %v527
    %v600 = vpop.f32.mrb[0].mxu0
    %v601 = vadd.f32 0.0, %v600
    %v602 = vpop.f32.mrb[0].mxu0
    %603 = vdwg.mxu0
    %v604 = vmul.f32 %v596, %v407
    %v605 = vmul.f32 %v601, %v408
    %607 = vrot.lane.b32.xlu0 %v499, 124
    %v608 = vpop.permute.xlu0 %607
    %v610 = vadd.f32 %v604, %v608
    %v611 = vadd.f32 %v605, %v608
    %vm612 = vcmp.gt.f32.partialorder %v610, 0.0
    %vm613 = vcmp.gt.f32.partialorder %v611, 0.0
    %v614 = vmin.f32 %v610, 0.0
    %v615 = vmin.f32 %v611, 0.0
    %v616 = vmul.f32 %v614, 1.442695
    %v617 = vpow.pop %v616
    %v618 = vmul.f32 %v615, 1.442695
    %v619 = vpow.pop %v618
    %v620 = vsub.f32 %v617, 1.0
    %v621 = vsub.f32 %v619, 1.0
    %v622 = vsel %vm612, %v610, %v620
    %v623 = vsel %vm613, %v611, %v621
    %626 = vrot.lane.b32.xlu0 %v622, 4
    %v627 = vpop.permute.xlu0 %626
    %628 = vrot.lane.b32.xlu0 %v623, 4
    %v629 = vpop.permute.xlu0 %628
    %vm632 = vcmask 64544
    %633 = vst.msk [vmem:[#allocation5] sm:$0xff] %vm632, %v627
    %634 = vst.msk [vmem:[#allocation5 + $0x8] sm:$0xff] %vm632, %v629
    %635 = vrot.lane.b32.xlu0 %v107, 120
    %v636 = vpop.permute.xlu0 %635
    %637 = vrot.lane.b32.xlu0 %v112, 120
    %v638 = vpop.permute.xlu0 %637
    %v642 = vsel %vm300, %v358, 0
    %v645 = vsel %vm300, %v360, 0
    %647 = vmatprep.subr.mxu0 0.0
    %648 = vmatpush1.msra.mxu0 %v636
    %649 = vmatprep.subr.mxu0 0.0
    %650 = vmatpush1.msra.mxu0 %v638
    %651 = vmatprep.subr.mxu0 0.0
    %652 = vmatpush1.msra.mxu0 0.0
    %653 = vmatprep.subr.mxu0 0.0
    %654 = vmatpush1.msra.mxu0 0.0
    %655 = vmatprep.subr.mxu0 0.0
    %656 = vmatpush1.msra.mxu0 0.0
    %657 = vmatprep.subr.mxu0 0.0
    %658 = vmatpush1.msra.mxu0 0.0
    %659 = vmatprep.subr.mxu0 0.0
    %660 = vmatpush1.msra.mxu0 0.0
    %661 = vmatprep.subr.mxu0 0.0
    %662 = vmatpush1.msra.mxu0 0.0
    %663 = vmatprep.subr.mxu0 0.0
    %664 = vmatpush1.msra.mxu0 0.0
    %665 = vmatprep.subr.mxu0 0.0
    %666 = vmatpush1.msra.mxu0 0.0
    %667 = vmatprep.subr.mxu0 0.0
    %668 = vmatpush1.msra.mxu0 0.0
    %669 = vmatprep.subr.mxu0 0.0
    %670 = vmatpush1.msra.mxu0 0.0
    %671 = vmatprep.subr.mxu0 0.0
    %672 = vmatpush1.msra.mxu0 0.0
    %673 = vmatprep.subr.mxu0 0.0
    %674 = vmatpush1.msra.mxu0 0.0
    %675 = vmatprep.subr.mxu0 0.0
    %676 = vmatpush1.msra.mxu0 0.0
    %677 = vmatprep.subr.mxu0 0.0
    %678 = vmatpush1.msra.mxu0 0.0
    %679 = vmatprep.subr.mxu0 0.0
    %680 = vmatpush1.msra.mxu0 0.0
    %681 = vmatprep.subr.mxu0 0.0
    %682 = vmatpush1.msra.mxu0 0.0
    %683 = vmatprep.subr.mxu0 0.0
    %684 = vmatpush1.msra.mxu0 0.0
    %685 = vmatprep.subr.mxu0 0.0
    %686 = vmatpush1.msra.mxu0 0.0
    %687 = vmatprep.subr.mxu0 0.0
    %688 = vmatpush1.msra.mxu0 0.0
    %689 = vmatprep.subr.mxu0 0.0
    %690 = vmatpush1.msra.mxu0 0.0
    %691 = vmatprep.subr.mxu0 0.0
    %692 = vmatpush1.msra.mxu0 0.0
    %693 = vmatprep.subr.mxu0 0.0
    %694 = vmatpush1.msra.mxu0 0.0
    %695 = vmatprep.subr.mxu0 0.0
    %696 = vmatpush1.msra.mxu0 0.0
    %697 = vmatprep.subr.mxu0 0.0
    %698 = vmatpush1.msra.mxu0 0.0
    %699 = vmatprep.subr.mxu0 0.0
    %700 = vmatpush1.msra.mxu0 0.0
    %701 = vmatprep.subr.mxu0 0.0
    %702 = vmatpush1.msra.mxu0 0.0
    %703 = vmatprep.subr.mxu0 0.0
    %704 = vmatpush1.msra.mxu0 0.0
    %705 = vmatprep.subr.mxu0 0.0
    %706 = vmatpush1.msra.mxu0 0.0
    %707 = vmatprep.subr.mxu0 0.0
    %708 = vmatpush1.msra.mxu0 0.0
    %709 = vmatprep.subr.mxu0 0.0
    %710 = vmatpush1.msra.mxu0 0.0
    %711 = vmatprep.mubr.f32.mxu0 0.0
    %712 = vmatmul.mubr.f32.gmra.mrb[0].mxu0 %v642
    %v713 = vpop.f32.mrb[0].mxu0
    %v714 = vadd.f32 0.0, %v713
    %v715 = vpop.f32.mrb[0].mxu0
    %716 = vmatprep.mubr.f32.mxu0 0.0
    %717 = vmatmul.mubr.f32.gmra.mrb[0].mxu0 %v645
    %v718 = vpop.f32.mrb[0].mxu0
    %v719 = vadd.f32 0.0, %v718
    %v720 = vpop.f32.mrb[0].mxu0
    %721 = vdwg.mxu0
    %v722 = vmul.f32 %v714, %v409
    %v723 = vmul.f32 %v719, %v410
    %724 = vrot.lane.b32.xlu0 %v499, 120
    %v725 = vpop.permute.xlu0 %724
    %v727 = vadd.f32 %v722, %v725
    %v728 = vadd.f32 %v723, %v725
    %vm729 = vcmp.gt.f32.partialorder %v727, 0.0
    %vm730 = vcmp.gt.f32.partialorder %v728, 0.0
    %v731 = vmin.f32 %v727, 0.0
    %v732 = vmin.f32 %v728, 0.0
    %v733 = vmul.f32 %v731, 1.442695
    %v734 = vpow.pop %v733
    %v735 = vmul.f32 %v732, 1.442695
    %v736 = vpow.pop %v735
    %v737 = vsub.f32 %v734, 1.0
    %v738 = vsub.f32 %v736, 1.0
    %v739 = vsel %vm729, %v727, %v737
    %v740 = vsel %vm730, %v728, %v738
    %743 = vrot.lane.b32.xlu0 %v739, 8
    %v744 = vpop.permute.xlu0 %743
    %745 = vrot.lane.b32.xlu0 %v740, 8
    %v746 = vpop.permute.xlu0 %745
    %vm749 = vcmask 97344
    %750 = vst.msk [vmem:[#allocation5] sm:$0xff] %vm749, %v744
    %751 = vst.msk [vmem:[#allocation5 + $0x8] sm:$0xff] %vm749, %v746
    %752 = vrot.lane.b32.xlu0 %v107, 116
    %v753 = vpop.permute.xlu0 %752
    %754 = vrot.lane.b32.xlu0 %v112, 116
    %v755 = vpop.permute.xlu0 %754
    %v759 = vsel %vm300, %v362, 0
    %v762 = vsel %vm300, %v364, 0
    %764 = vmatprep.subr.mxu0 0.0
    %765 = vmatpush1.msra.mxu0 %v753
    %766 = vmatprep.subr.mxu0 0.0
    %767 = vmatpush1.msra.mxu0 %v755
    %768 = vmatprep.subr.mxu0 0.0
    %769 = vmatpush1.msra.mxu0 0.0
    %770 = vmatprep.subr.mxu0 0.0
    %771 = vmatpush1.msra.mxu0 0.0
    %772 = vmatprep.subr.mxu0 0.0
    %773 = vmatpush1.msra.mxu0 0.0
    %774 = vmatprep.subr.mxu0 0.0
    %775 = vmatpush1.msra.mxu0 0.0
    %776 = vmatprep.subr.mxu0 0.0
    %777 = vmatpush1.msra.mxu0 0.0
    %778 = vmatprep.subr.mxu0 0.0
    %779 = vmatpush1.msra.mxu0 0.0
    %780 = vmatprep.subr.mxu0 0.0
    %781 = vmatpush1.msra.mxu0 0.0
    %782 = vmatprep.subr.mxu0 0.0
    %783 = vmatpush1.msra.mxu0 0.0
    %784 = vmatprep.subr.mxu0 0.0
    %785 = vmatpush1.msra.mxu0 0.0
    %786 = vmatprep.subr.mxu0 0.0
    %787 = vmatpush1.msra.mxu0 0.0
    %788 = vmatprep.subr.mxu0 0.0
    %789 = vmatpush1.msra.mxu0 0.0
    %790 = vmatprep.subr.mxu0 0.0
    %791 = vmatpush1.msra.mxu0 0.0
    %792 = vmatprep.subr.mxu0 0.0
    %793 = vmatpush1.msra.mxu0 0.0
    %794 = vmatprep.subr.mxu0 0.0
    %795 = vmatpush1.msra.mxu0 0.0
    %796 = vmatprep.subr.mxu0 0.0
    %797 = vmatpush1.msra.mxu0 0.0
    %798 = vmatprep.subr.mxu0 0.0
    %799 = vmatpush1.msra.mxu0 0.0
    %800 = vmatprep.subr.mxu0 0.0
    %801 = vmatpush1.msra.mxu0 0.0
    %802 = vmatprep.subr.mxu0 0.0
    %803 = vmatpush1.msra.mxu0 0.0
    %804 = vmatprep.subr.mxu0 0.0
    %805 = vmatpush1.msra.mxu0 0.0
    %806 = vmatprep.subr.mxu0 0.0
    %807 = vmatpush1.msra.mxu0 0.0
    %808 = vmatprep.subr.mxu0 0.0
    %809 = vmatpush1.msra.mxu0 0.0
    %810 = vmatprep.subr.mxu0 0.0
    %811 = vmatpush1.msra.mxu0 0.0
    %812 = vmatprep.subr.mxu0 0.0
    %813 = vmatpush1.msra.mxu0 0.0
    %814 = vmatprep.subr.mxu0 0.0
    %815 = vmatpush1.msra.mxu0 0.0
    %816 = vmatprep.subr.mxu0 0.0
    %817 = vmatpush1.msra.mxu0 0.0
    %818 = vmatprep.subr.mxu0 0.0
    %819 = vmatpush1.msra.mxu0 0.0
    %820 = vmatprep.subr.mxu0 0.0
    %821 = vmatpush1.msra.mxu0 0.0
    %822 = vmatprep.subr.mxu0 0.0
    %823 = vmatpush1.msra.mxu0 0.0
    %824 = vmatprep.subr.mxu0 0.0
    %825 = vmatpush1.msra.mxu0 0.0
    %826 = vmatprep.subr.mxu0 0.0
    %827 = vmatpush1.msra.mxu0 0.0
    %828 = vmatprep.mubr.f32.mxu0 0.0
    %829 = vmatmul.mubr.f32.gmra.mrb[0].mxu0 %v759
    %v830 = vpop.f32.mrb[0].mxu0
    %v831 = vadd.f32 0.0, %v830
    %v832 = vpop.f32.mrb[0].mxu0
    %833 = vmatprep.mubr.f32.mxu0 0.0
    %834 = vmatmul.mubr.f32.gmra.mrb[0].mxu0 %v762
    %v835 = vpop.f32.mrb[0].mxu0
    %v836 = vadd.f32 0.0, %v835
    %v837 = vpop.f32.mrb[0].mxu0
    %838 = vdwg.mxu0
    %v839 = vmul.f32 %v831, %v411
    %v840 = vmul.f32 %v836, %v412
    %841 = vrot.lane.b32.xlu0 %v499, 116
    %v842 = vpop.permute.xlu0 %841
    %v844 = vadd.f32 %v839, %v842
    %v845 = vadd.f32 %v840, %v842
    %vm846 = vcmp.gt.f32.partialorder %v844, 0.0
    %vm847 = vcmp.gt.f32.partialorder %v845, 0.0
    %v848 = vmin.f32 %v844, 0.0
    %v849 = vmin.f32 %v845, 0.0
    %v850 = vmul.f32 %v848, 1.442695
    %v851 = vpow.pop %v850
    %v852 = vmul.f32 %v849, 1.442695
    %v853 = vpow.pop %v852
    %v854 = vsub.f32 %v851, 1.0
    %v855 = vsub.f32 %v853, 1.0
    %v856 = vsel %vm846, %v844, %v854
    %v857 = vsel %vm847, %v845, %v855
    %860 = vrot.lane.b32.xlu0 %v856, 12
    %v861 = vpop.permute.xlu0 %860
    %862 = vrot.lane.b32.xlu0 %v857, 12
    %v863 = vpop.permute.xlu0 %862
    %vm866 = vcmask 130144
    %867 = vst.msk [vmem:[#allocation5] sm:$0xff] %vm866, %v861
    %868 = vst.msk [vmem:[#allocation5 + $0x8] sm:$0xff] %vm866, %v863
    // Predicated region
    $region18: #{tpu_custom_call.1} parent=1 // pred_check
      _
    $region19: #{tpu_custom_call.1} parent=1 // pred_check_branch
      %870 = sbr.rel (0) target = $region21
    $region20: #{tpu_custom_call.1} parent=1 // pred_region
      %s872 = ssub.s32 256, 256
      %873 = vsyncadd [#allocation4], %s872
      %s874 = sshll.u32 [#allocation5], 4
      %s875 = int_to_ptr.vmem [resolvable:$true] %s874
      %880 = dma.vmem_to_hbm [thread:$0]  %s875, 256, %s3, [#allocation4], 128, 128, 8
    $region21: #{tpu_custom_call.1} parent=1 // pred_fallthru
      _
    // Predicated region
    $region22: #{tpu_custom_call.1} parent=1 // pred_check
      _
    $region23: #{tpu_custom_call.1} parent=1 // pred_check_branch
      %882 = sbr.rel (0) target = $region25
    $region24: #{tpu_custom_call.1} parent=1 // pred_region
      %883 = dma.done [#allocation4], 256
    $region25: #{tpu_custom_call.1} parent=1 // pred_fallthru
      _
    %884 = vsyncpa [#allocation3], 1
    %885 = vsyncpa [#allocation4], 1

</llo_original>
